<compile_context>
chip_gen: v6e
topology: v6e:2x2x1
jax: 0.10.0
libtpu: 0.0.40
codegen_flags: <defaults>
</compile_context>

<pallas_src>
import math

import jax
import jax.numpy as jnp
from jax.experimental import pallas as pl
from jax.experimental.pallas import tpu as pltpu


def _round_up(a, b):
    return ((a + b - 1) // b) * b


def _cdiv(a, b):
    return -(-a // b)


def _linear_ctc_kernel(x_ref, w_ref, b_ref, o_ref):
    # x_ref: (tm, D)  w_ref: (D, tn)  b_ref: (1, tn) f32  o_ref: (tm, tn)
    acc = jnp.dot(x_ref[...], w_ref[...], preferred_element_type=jnp.float32)
    o_ref[...] = (acc + b_ref[...]).astype(o_ref.dtype)


def prepare_linear_ctc_params(weight, bias, *, tn=2048,
                              compute_dtype=jnp.bfloat16):
    """One-time parameter prep -- keep OUT of the per-call hot path.

    weight: (V, D) nn.Linear layout;  bias: (V,)
    Returns (weight_t (D, Vp), bias2d (1, Vp) f32, V, tn) where Vp is a
    multiple of tn, so the forward never has to cast/pad the parameters.
    """
    V, D = weight.shape
    tn = min(tn, _round_up(V, 128))          # lane-dense tile, clipped to V
    Vp = _round_up(V, tn)
    w = jnp.asarray(weight).T.astype(compute_dtype)             # (D, V)
    b = jnp.asarray(bias).astype(jnp.float32).reshape(1, V)     # f32 bias add
    if Vp != V:
        w = jnp.pad(w, ((0, 0), (0, Vp - V)))
        b = jnp.pad(b, ((0, 0), (0, Vp - V)))
    return w, b, V, tn


def linear_ctc_head(x, weight_t, bias2d, *, vocab_size=None, tn=None, tm=512,
                    compute_dtype=jnp.bfloat16, out_dtype=None,
                    single_buffer_params=None):
    """Forward of LinearCTCHead.

    x:        (B, T, D)
    weight_t: (D, Vp)  pre-transposed / pre-cast / pre-padded weight
    bias2d:   (1, Vp)  f32 bias (pre-padded)
    Returns (B, T, vocab_size) logits in out_dtype (default x.dtype).
    """
    B, T, D = x.shape
    Dw, Vp = weight_t.shape
    assert Dw == D, "weight_t must be (model_dim, padded_vocab)"
    M = B * T
    out_dtype = x.dtype if out_dtype is None else out_dtype

    in_bytes = jnp.dtype(compute_dtype).itemsize
    out_bytes = jnp.dtype(out_dtype).itemsize

    # --- vocab tile: must divide Vp (guaranteed when tn comes from prepare) --
    if tn is None:
        tn = min(2048, Vp)
    tn = min(tn, Vp)
    if Vp % tn != 0:
        # fall back to the largest multiple-of-128 divisor of Vp (or Vp itself)
        tn = next((c for c in range(tn - tn % 128, 127, -128) if Vp % c == 0), Vp)

    # --- balanced row tile: avoid a mostly-padded trailing tile -------------
    row_align = 16 if in_bytes < 4 else 8
    tm_max = max(tm, row_align)
    n_row_tiles = _cdiv(M, tm_max)
    tm = min(_round_up(_cdiv(M, n_row_tiles), row_align), _round_up(M, row_align))
    Mp = _round_up(M, tm)

    # --- activations: cast only if needed, pad only if needed ---------------
    x2d = x.reshape(M, D)
    if x2d.dtype != compute_dtype:
        x2d = x2d.astype(compute_dtype)
    if Mp != M:
        x2d = jnp.pad(x2d, ((0, Mp - M), (0, 0)))

    # --- parameters already prepped; only cast on the (slow) unprepped path -
    if weight_t.dtype != compute_dtype:
        weight_t = weight_t.astype(compute_dtype)
    if bias2d.ndim == 1:
        bias2d = bias2d.reshape(1, Vp)
    if bias2d.dtype != jnp.float32:
        bias2d = bias2d.astype(jnp.float32)

    # --- resident-parameter buffering (helps v7x's 64 MiB VMEM) -------------
    w_tile_bytes = D * tn * in_bytes
    if single_buffer_params is None:
        single_buffer_params = w_tile_bytes >= (8 << 20)
    if single_buffer_params:
        # Weight/bias block index is constant across the inner row axis, so a
        # second buffer only helps at the rare vocab-tile boundary.
        w_spec = pl.BlockSpec((D, tn), lambda j, i: (0, j),
                              pipeline_mode=pl.Buffered(1))
        b_spec = pl.BlockSpec((1, tn), lambda j, i: (0, j),
                              pipeline_mode=pl.Buffered(1))
        n_param_bufs = 1
    else:
        w_spec = pl.BlockSpec((D, tn), lambda j, i: (0, j))
        b_spec = pl.BlockSpec((1, tn), lambda j, i: (0, j))
        n_param_bufs = 2

    # --- right-sized VMEM limit from the actual tile footprint --------------
    vmem_need = (2 * tm * D * in_bytes                       # x (double-buffered)
                 + n_param_bufs * (D * tn * in_bytes + tn * 4)  # weight + bias
                 + 2 * tm * tn * out_bytes)                  # out (double-buffered)
    vmem_limit = min(max(int(vmem_need * 3 // 2) + (1 << 20), 8 << 20), 64 << 20)

    # --- scheduler hint: x is re-streamed once per vocab tile ---------------
    n_vocab_tiles = Vp // tn
    cost = pl.CostEstimate(
        flops=2 * Mp * D * Vp,
        transcendentals=0,
        bytes_accessed=(Mp * D * in_bytes * n_vocab_tiles
                        + D * Vp * in_bytes + Vp * 4
                        + Mp * Vp * out_bytes),
    )

    # Grid: vocab tile j OUTER, row tile i INNER -> weight/bias blocks keep the
    # same index across all inner steps and stay resident while x streams.
    grid = (n_vocab_tiles, Mp // tm)

    out2d = pl.pallas_call(
        _linear_ctc_kernel,
        out_shape=jax.ShapeDtypeStruct((Mp, Vp), out_dtype),
        grid_spec=pltpu.PrefetchScalarGridSpec(
            num_scalar_prefetch=0,
            grid=grid,
            in_specs=[
                pl.BlockSpec((tm, D), lambda j, i: (i, 0)),   # x row-tile (streams)
                w_spec,                                       # weight col-tile (resident per j)
                b_spec,                                       # bias col-tile (resident per j)
            ],
            out_specs=pl.BlockSpec((tm, tn), lambda j, i: (i, j)),
        ),
        compiler_params=pltpu.CompilerParams(
            dimension_semantics=("parallel", "parallel"),
            vmem_limit_bytes=vmem_limit,
        ),
        cost_estimate=cost,
    )(x2d, weight_t, bias2d)

    V = Vp if vocab_size is None else vocab_size
    if Mp != M or V != Vp:
        # Only materializes a copy when padding was actually needed; with
        # prep-time padding + balanced tiles this branch is usually skipped
        # (keep padded vocab downstream / mask in the loss to skip it always).
        out2d = out2d[:M, :V]
    return out2d.reshape(B, T, V)


def init_linear_ctc_params(key, model_dim, vocab_size, dtype=jnp.float32):
    """xavier_uniform_ weight (V, D) and zero bias, matching reset_parameters()."""
    fan_in, fan_out = model_dim, vocab_size
    bound = math.sqrt(6.0 / (fan_in + fan_out))
    weight = jax.random.uniform(
        key, (vocab_size, model_dim), dtype=dtype, minval=-bound, maxval=bound)
    bias = jnp.zeros((vocab_size,), dtype=dtype)
    return weight, bias


if __name__ == "__main__":
    B, T, D, V = 2, 8, 32, 128   # batch, seq, model_dim, vocab_size

    key = jax.random.PRNGKey(0)
    kx, kw = jax.random.split(key)

    x = jax.random.normal(kx, (B, T, D), dtype=jnp.float32)
    weight, bias = init_linear_ctc_params(kw, D, V)   # PyTorch layout (V, D)

    ref = x @ weight.T + bias

    # One-time parameter prep (bf16 fast path + f32 reference path).
    w_bf16, b_bf16, V_out, tn_bf16 = prepare_linear_ctc_params(
        weight, bias, compute_dtype=jnp.bfloat16)
    w_f32, b_f32, _, tn_f32 = prepare_linear_ctc_params(
        weight, bias, compute_dtype=jnp.float32)

    # Default fast path: bf16 MXU inputs, f32 accumulation, f32 output.
    out = jax.block_until_ready(
        linear_ctc_head(x, w_bf16, b_bf16, vocab_size=V_out, tn=tn_bf16,
                        compute_dtype=jnp.bfloat16))
    assert out.shape == (B, T, V)
    assert jnp.allclose(out, ref, atol=5e-2, rtol=5e-2)

    # Full-precision path: tight check of the kernel structure.
    out_f32 = jax.block_until_ready(
        linear_ctc_head(x, w_f32, b_f32, vocab_size=V_out, tn=tn_f32,
                        compute_dtype=jnp.float32))
    assert jnp.allclose(out_f32, ref, atol=1e-4, rtol=1e-4)

    print("KERNEL_OK")
</pallas_src>

<mosaic_0001>
module attributes {stable_mosaic.version = 11 : i64} {
  func.func @_linear_ctc_kernel(%arg0: i32, %arg1: i32, %arg2: memref<16x32xbf16, #tpu.memory_space<vmem>>, %arg3: memref<32x128xbf16, #tpu.memory_space<vmem>>, %arg4: memref<1x128xf32, #tpu.memory_space<vmem>>, %arg5: memref<16x128xf32, #tpu.memory_space<vmem>>) attributes {dimension_semantics = [#tpu.dimension_semantics<parallel>, #tpu.dimension_semantics<parallel>], iteration_bounds = array<i64: 1, 1>, scalar_prefetch = 0 : i64, scratch_operands = 0 : i64, tpu.core_type = #tpu.core_type<tc>, window_params = [{transform_indices = @transform_0, window_bounds = array<i64: 16, 32>}, {transform_indices = @transform_1, window_bounds = array<i64: 32, 128>}, {transform_indices = @transform_2, window_bounds = array<i64: 1, 128>}, {transform_indices = @transform_3, window_bounds = array<i64: 16, 128>}]} {
    %c0 = arith.constant 0 : index
    %c0_0 = arith.constant 0 : index
    %0 = vector.load %arg2[%c0, %c0_0] : memref<16x32xbf16, #tpu.memory_space<vmem>>, vector<16x32xbf16>
    %c0_1 = arith.constant 0 : index
    %c0_2 = arith.constant 0 : index
    %1 = vector.load %arg3[%c0_1, %c0_2] : memref<32x128xbf16, #tpu.memory_space<vmem>>, vector<32x128xbf16>
    %cst = arith.constant dense<0.000000e+00> : vector<16x128xf32>
    %2 = tpu.matmul %0, %1, %cst {dimension_numbers = #tpu.dot_dimension_numbers<[1], [0], [0], [1], [0, 0, 1, 1], [], []>} : vector<16x32xbf16>, vector<32x128xbf16>, vector<16x128xf32> -> vector<16x128xf32>
    %c0_3 = arith.constant 0 : index
    %c0_4 = arith.constant 0 : index
    %3 = vector.load %arg4[%c0_3, %c0_4] : memref<1x128xf32, #tpu.memory_space<vmem>>, vector<1x128xf32>
    %4 = vector.broadcast %3 : vector<1x128xf32> to vector<16x128xf32>
    %5 = arith.addf %2, %4 : vector<16x128xf32>
    %c0_5 = arith.constant 0 : index
    %c0_6 = arith.constant 0 : index
    %6 = vector.load %arg5[%c0_5, %c0_6] : memref<16x128xf32, #tpu.memory_space<vmem>>, vector<16x128xf32>
    tpu.vector_store %arg5[%c0_5, %c0_6], %5 {strides = array<i32>} : memref<16x128xf32, #tpu.memory_space<vmem>>, vector<16x128xf32>,
    return
  }
  func.func @transform_0(%arg0: i32, %arg1: i32) -> (i32, i32) {
    %c0_i32 = arith.constant 0 : i32
    %c0_i32_0 = arith.constant 0 : i32
    return %arg1, %c0_i32 : i32, i32
  }
  func.func @transform_1(%arg0: i32, %arg1: i32) -> (i32, i32) {
    %c0_i32 = arith.constant 0 : i32
    %c0_i32_0 = arith.constant 0 : i32
    return %c0_i32, %arg0 : i32, i32
  }
  func.func @transform_2(%arg0: i32, %arg1: i32) -> (i32, i32) {
    %c0_i32 = arith.constant 0 : i32
    %c0_i32_0 = arith.constant 0 : i32
    return %c0_i32, %arg0 : i32, i32
  }
  func.func @transform_3(%arg0: i32, %arg1: i32) -> (i32, i32) {
    %c0_i32 = arith.constant 0 : i32
    return %arg1, %arg0 : i32, i32
  }
}

</mosaic_0001>

<llo_original>
// kernel: tpu_custom_call.1
$region0: #{tpu_custom_call.1}
  #allocation0 [shape = 'u32[]', space=smem, size = 0x4, offset = 0x4, fixed_abs, tag = 'smem constant byte address 0x4 - core index']
  #allocation1 [shape = 'u32[144,128]{1,0:T(1,128)}', space=vmem, size = 0x12000, scoped, tag = 'internal scratch']
  %s0 = inlined_call_operand.hbm [shape: bf16[16,32], index: 0, kind: input, shape index: {}]
  %s1 = inlined_call_operand.hbm [shape: bf16[32,128], index: 1, kind: input, shape index: {}]
  %s2 = inlined_call_operand.vmem [shape: f32[1,128], index: 2, kind: input, shape index: {}]
  %s3 = inlined_call_operand.hbm [shape: f32[16,128], index: 3, kind: output, shape index: {}]
  %s4 = sld [smem:[#allocation0]]
  $region30: #{tpu_custom_call.1} parent=0
    _
  %s6 = ssub.s32 1, %s4
  %s7 = scalar_select 0, %s6, %s4
  $region1: #{tpu_custom_call.1} parent=0
    #allocation2 [shape = 'u8[4096]{0}', space=vmem, size = 0x1000, scoped, tag = 'input window, operand 0, single buffered']
    #allocation3 [shape = 's32[1]{0}', space=sflag, size = 0x4, scoped, tag = 'scoped memory for tpu_custom_call.1']
    #allocation4 [shape = 's32[1]{0}', space=sflag, size = 0x4, scoped, tag = 'scoped memory for tpu_custom_call.1']
    #allocation5 [shape = 'u8[8192]{0}', space=vmem, size = 0x2000, scoped, tag = 'input window, operand 1, single buffered']
    #allocation6 [shape = 's32[1]{0}', space=sflag, size = 0x4, scoped, tag = 'scoped memory for tpu_custom_call.1']
    #allocation7 [shape = 'u8[8192]{0}', space=vmem, size = 0x2000, scoped, tag = 'output window, operand 0, single buffered']
    %8 = vsyncpa [#allocation3], 0
    %9 = vsyncpa [#allocation6], 0
    %10 = vsyncpa [#allocation4], 0
    // Predicated region
    $region2: #{tpu_custom_call.1} parent=1 // pred_check
      _
    $region3: #{tpu_custom_call.1} parent=1 // pred_check_branch
      %12 = sbr.rel (0) target = $region5
    $region4: #{tpu_custom_call.1} parent=1 // pred_region
      %s14 = ssub.s32 128, 128
      %15 = vsyncadd [#allocation3], %s14
      %s16 = sshll.u32 [#allocation2], 4
      %s17 = int_to_ptr.vmem [resolvable:$true] %s16
      %22 = dma.hbm_to_vmem [thread:$0]  %s0, 128, %s17, [#allocation3], 64, 64, 4
    $region5: #{tpu_custom_call.1} parent=1 // pred_fallthru
      _
    // Predicated region
    $region6: #{tpu_custom_call.1} parent=1 // pred_check
      _
    $region7: #{tpu_custom_call.1} parent=1 // pred_check_branch
      %24 = sbr.rel (0) target = $region9
    $region8: #{tpu_custom_call.1} parent=1 // pred_region
      %s26 = ssub.s32 256, 256
      %27 = vsyncadd [#allocation6], %s26
      %s28 = sshll.u32 [#allocation5], 4
      %s29 = int_to_ptr.vmem [resolvable:$true] %s28
      %34 = dma.hbm_to_vmem [thread:$0]  %s1, 256, %s29, [#allocation6], 64, 64, 4
    $region9: #{tpu_custom_call.1} parent=1 // pred_fallthru
      _
    // Predicated region
    $region10: #{tpu_custom_call.1} parent=1 // pred_check
      _
    $region11: #{tpu_custom_call.1} parent=1 // pred_check_branch
      %36 = sbr.rel (0) target = $region13
    $region12: #{tpu_custom_call.1} parent=1 // pred_region
      _
    $region13: #{tpu_custom_call.1} parent=1 // pred_fallthru
      _
    // Predicated region
    $region14: #{tpu_custom_call.1} parent=1 // pred_check
      _
    $region15: #{tpu_custom_call.1} parent=1 // pred_check_branch
      %38 = sbr.rel (0) target = $region17
    $region16: #{tpu_custom_call.1} parent=1 // pred_region
      %39 = dma.done [#allocation3], 128
    $region17: #{tpu_custom_call.1} parent=1 // pred_fallthru
      _
    // Predicated region
    $region18: #{tpu_custom_call.1} parent=1 // pred_check
      _
    $region19: #{tpu_custom_call.1} parent=1 // pred_check_branch
      %41 = sbr.rel (0) target = $region21
    $region20: #{tpu_custom_call.1} parent=1 // pred_region
      %42 = dma.done [#allocation6], 256
    $region21: #{tpu_custom_call.1} parent=1 // pred_fallthru
      _
    %v44 = vld [vmem:[#allocation2] sm:$0xf]
    %v45 = vld [vmem:[#allocation2 + $0x4] sm:$0xf]
    %v46 = vld [vmem:[#allocation5] sm:$0xf]
    %v47 = vld [vmem:[#allocation5 + $0x4] sm:$0xf]
    %v48 = vld [vmem:[#allocation5 + $0x8] sm:$0xf]
    %v49 = vld [vmem:[#allocation5 + $0xc] sm:$0xf]
    %v50 = vld [vmem:[%s2] sm:$0x1]
    %v52 = vlaneseq
    %v53 = vshrl.u32 %v52, 7
    %v54 = vsub.s32 0, %v53
    %v55 = vrot.slane %v50, %v54
    %v59 = vunpack.c.l.b16 %v44
    %v60 = vunpack.c.l.b16 %v45
    %v61 = vpack.c.b16 %v60, %v59
    %v66 = vunpack.c.l.b16 %v46
    %v67 = vunpack.c.l.b16 %v47
    %v68 = vunpack.c.l.b16 %v48
    %v69 = vunpack.c.l.b16 %v49
    %v70 = vpack.c.b16 %v67, %v66
    %v71 = vpack.c.b16 %v69, %v68
    %vm74 = vcmask 261120
    %v76 = vsel %vm74, %v61, 0
    %78 = vmatprep.subr.bf16.mxu0 0
    %79 = vmatpush1.bf16.msra.mxu0 0
    %80 = vmatprep.subr.bf16.mxu0 0
    %81 = vmatpush1.bf16.msra.mxu0 0
    %82 = vmatprep.subr.bf16.mxu0 0
    %83 = vmatpush1.bf16.msra.mxu0 0
    %84 = vmatprep.subr.bf16.mxu0 0
    %85 = vmatpush1.bf16.msra.mxu0 0
    %86 = vmatprep.subr.bf16.mxu0 0
    %87 = vmatpush1.bf16.msra.mxu0 0
    %88 = vmatprep.subr.bf16.mxu0 0
    %89 = vmatpush1.bf16.msra.mxu0 0
    %90 = vmatprep.subr.bf16.mxu0 0
    %91 = vmatpush1.bf16.msra.mxu0 %v71
    %92 = vmatprep.subr.bf16.mxu0 0
    %93 = vmatpush1.bf16.msra.mxu0 %v70
    %94 = vmatprep.subr.bf16.mxu0 0
    %95 = vmatpush2.bf16.msra.mxu0 0
    %96 = vmatprep.subr.bf16.mxu0 0
    %97 = vmatpush2.bf16.msra.mxu0 0
    %98 = vmatprep.subr.bf16.mxu0 0
    %99 = vmatpush2.bf16.msra.mxu0 0
    %100 = vmatprep.subr.bf16.mxu0 0
    %101 = vmatpush2.bf16.msra.mxu0 0
    %102 = vmatprep.subr.bf16.mxu0 0
    %103 = vmatpush2.bf16.msra.mxu0 0
    %104 = vmatprep.subr.bf16.mxu0 0
    %105 = vmatpush2.bf16.msra.mxu0 0
    %106 = vmatprep.subr.bf16.mxu0 0
    %107 = vmatpush2.bf16.msra.mxu0 0
    %108 = vmatprep.subr.bf16.mxu0 0
    %109 = vmatpush2.bf16.msra.mxu0 0
    %110 = vmatprep.mubr.bf16.mxu0 0
    %111 = vmatmul.mubr.bf16.gmra.mxu0 %v76
    %v112 = vpop.f32.mrf.mxu0
    %v113 = vadd.f32 %v55, %v112
    %v114 = vpop.f32.mrf.mxu0
    %v115 = vpop.f32.mrf.mxu0
    %v116 = vadd.f32 %v55, %v115
    %v117 = vpop.f32.mrf.mxu0
    %118 = vdwg.mxu0
    %119 = vst [vmem:[#allocation7] sm:$0xff] %v113
    %120 = vst [vmem:[#allocation7 + $0x8] sm:$0xff] %v116
    // Predicated region
    $region22: #{tpu_custom_call.1} parent=1 // pred_check
      _
    $region23: #{tpu_custom_call.1} parent=1 // pred_check_branch
      %122 = sbr.rel (0) target = $region25
    $region24: #{tpu_custom_call.1} parent=1 // pred_region
      %s124 = ssub.s32 256, 256
      %125 = vsyncadd [#allocation4], %s124
      %s126 = sshll.u32 [#allocation7], 4
      %s127 = int_to_ptr.vmem [resolvable:$true] %s126
      %132 = dma.vmem_to_hbm [thread:$0]  %s127, 256, %s3, [#allocation4], 128, 128, 8
    $region25: #{tpu_custom_call.1} parent=1 // pred_fallthru
      _
    // Predicated region
    $region26: #{tpu_custom_call.1} parent=1 // pred_check
      _
    $region27: #{tpu_custom_call.1} parent=1 // pred_check_branch
      %134 = sbr.rel (0) target = $region29
    $region28: #{tpu_custom_call.1} parent=1 // pred_region
      %135 = dma.done [#allocation4], 256
    $region29: #{tpu_custom_call.1} parent=1 // pred_fallthru
      _
    %136 = vsyncpa [#allocation3], 1
    %137 = vsyncpa [#allocation6], 1
    %138 = vsyncpa [#allocation4], 1

</llo_original>
